<compile_context>
chip_gen: v5e
topology: v5e:2x2
jax: 0.10.0
libtpu: 0.0.40
codegen_flags: <defaults>
</compile_context>

<pallas_src>
import itertools
from functools import partial

import jax
import jax.numpy as jnp
from jax.experimental import pallas as pl
from jax.experimental.pallas import tpu as pltpu


def _round_up(x, m):
    return (x + m - 1) // m * m


def _attr_kernel(x_ref, w_ref, b_ref, o_ref, *, group_sizes, a_total):
    """Fused: logits = x @ W + b (bf16 MXU, f32 acc), then per-group softmax (f32).

    x_ref: (TB, D) bf16     w_ref: (D, A_pad) bf16
    b_ref: (1, A_pad) f32   o_ref: (TB, A_pad) f32
    """
    logits = jnp.dot(x_ref[...], w_ref[...],
                     preferred_element_type=jnp.float32) + b_ref[...]
    _, a_pad = logits.shape
    col = jax.lax.broadcasted_iota(jnp.int32, (1, a_pad), 1)

    # Per-column group max, written full-width (no lane slicing).
    m_full = jnp.zeros_like(logits)
    start = 0
    for g in group_sizes:  # static Python loop — group boundaries are compile-time constants
        mask = (col >= start) & (col < start + g)                       # (1, A_pad)
        m_g = jnp.max(jnp.where(mask, logits, -jnp.inf), axis=1, keepdims=True)
        m_full = jnp.where(mask, m_g, m_full)
        start += g

    valid = col < a_total
    e = jnp.where(valid, jnp.exp(logits - m_full), 0.0)                 # pad cols -> 0

    # Per-column group sum, full-width; pad columns get denominator 1.
    s_full = jnp.ones_like(logits)
    start = 0
    for g in group_sizes:
        mask = (col >= start) & (col < start + g)
        s_g = jnp.sum(jnp.where(mask, e, 0.0), axis=1, keepdims=True)
        s_full = jnp.where(mask, s_g, s_full)
        start += g

    # Single lane-dense, unmasked store of the whole (TB, A_pad) tile.
    o_ref[...] = (e * pl.reciprocal(s_full)).astype(o_ref.dtype)


def attribute_output_forward(x, w_packed, b_packed, group_sizes, a_total, *, block_b=256):
    """x: (B, D) float; w_packed: (D, A_pad) bf16; b_packed: (1, A_pad) f32.

    Returns merged softmax probabilities of shape (B, A_total).
    """
    B, D = x.shape
    A_pad = w_packed.shape[1]

    # Tile over boxes: block_b rows per grid step (divisible by 8), B padded to a tile multiple.
    tb = min(int(block_b), _round_up(max(B, 1), 8))
    tb = _round_up(tb, 8)
    B_pad = _round_up(B, tb)
    if B_pad != B:
        x = jnp.pad(x, ((0, B_pad - B), (0, 0)))
    x = x.astype(jnp.bfloat16)   # halve HBM traffic for activations; MXU runs bf16

    grid = (B_pad // tb,)
    kernel = partial(_attr_kernel,
                     group_sizes=tuple(int(g) for g in group_sizes),
                     a_total=int(a_total))

    cost = pl.CostEstimate(
        flops=2 * B_pad * D * A_pad,
        transcendentals=B_pad * A_pad,
        bytes_accessed=(B_pad * D * 2              # x (bf16)
                        + D * A_pad * 2            # w (bf16)
                        + A_pad * 4                # b (f32)
                        + B_pad * A_pad * 4))      # out (f32)

    out = pl.pallas_call(
        kernel,
        out_shape=jax.ShapeDtypeStruct((B_pad, A_pad), jnp.float32),
        grid=grid,
        in_specs=[
            pl.BlockSpec((tb, D), lambda i: (i, 0)),       # x tile streams over grid
            pl.BlockSpec((D, A_pad), lambda i: (0, 0)),    # weights stay VMEM-resident
            pl.BlockSpec((1, A_pad), lambda i: (0, 0)),    # bias stays VMEM-resident
        ],
        out_specs=pl.BlockSpec((tb, A_pad), lambda i: (i, 0)),
        compiler_params=pltpu.CompilerParams(
            dimension_semantics=("parallel",)),            # megacore-shardable on v7x
        cost_estimate=cost,
    )(x, w_packed, b_packed)

    # Slice off row/column padding before returning.
    return out[:B, :a_total]


class AttributeOutputLayersPallas:
    """One linear layer per attribute type + per-type softmax, fused in one Pallas kernel."""

    def __init__(self, input_size, mapped_ids_list, key):
        self.input_size = input_size
        self.group_sizes = [len(m) for m in mapped_ids_list]
        self.a_total = sum(self.group_sizes)
        self.a_pad = _round_up(self.a_total, 128)   # lane-dense output width

        ws, bs = [], []
        for g in self.group_sizes:
            key, wk = jax.random.split(key)
            # nn.init.normal_(weight, std=0.01); nn.init.constant_(bias, 0)
            w = 0.01 * jax.random.normal(wk, (g, input_size), dtype=jnp.float32)
            ws.append(w.T)                                   # pack as (D, A_i)
            bs.append(jnp.zeros((g,), dtype=jnp.float32))
        w_packed = jnp.concatenate(ws, axis=1)               # (D, A_total)
        b_packed = jnp.concatenate(bs)                       # (A_total,)

        pad = self.a_pad - self.a_total
        if pad:
            w_packed = jnp.pad(w_packed, ((0, 0), (0, pad)))
            b_packed = jnp.pad(b_packed, ((0, pad),))
        self.w_packed = w_packed.astype(jnp.bfloat16)        # (D, A_pad) bf16
        self.b_packed = b_packed[None, :].astype(jnp.float32)  # (1, A_pad) f32

    def __call__(self, x, num_boxes_per_image, *, block_b=256):
        merged_probs = attribute_output_forward(
            x, self.w_packed, self.b_packed, self.group_sizes, self.a_total,
            block_b=block_b)
        # Split per image from the Python list (jit-safe: no tracer->int conversion).
        split_points = list(itertools.accumulate(num_boxes_per_image))[:-1]
        return jnp.split(merged_probs, split_points, axis=0)


def _reference(x, w_packed_bf16, b_packed, group_sizes, a_total):
    """Pure-JAX reference using the same bf16-weights / f32-accumulate path."""
    logits = jnp.dot(x.astype(jnp.bfloat16), w_packed_bf16,
                     preferred_element_type=jnp.float32) + b_packed
    logits = logits[:, :a_total]
    outs, start = [], 0
    for g in group_sizes:
        seg = logits[:, start:start + g]
        m = jnp.max(seg, axis=1, keepdims=True)
        e = jnp.exp(seg - m)
        outs.append(e / jnp.sum(e, axis=1, keepdims=True))
        start += g
    return jnp.concatenate(outs, axis=1)


if __name__ == "__main__":
    key = jax.random.PRNGKey(0)

    # Small synthetic config: box-feature dim D=32, three attribute types with 6/4/3 classes,
    # 40 proposal boxes across two "images".  block_b=16 -> grid of 3 tiles (exercises the
    # pipelined, parallel B-axis; padded rows/columns are zero-filled and sliced off).
    input_size = 32
    mapped_ids_list = [list(range(6)), list(range(4)), list(range(3))]
    num_boxes_per_image = [24, 16]
    B = sum(num_boxes_per_image)

    key, xk, mk = jax.random.split(key, 3)
    x = jax.random.normal(xk, (B, input_size), dtype=jnp.float32)

    model = AttributeOutputLayersPallas(input_size, mapped_ids_list, mk)

    per_image_probs = model(x, num_boxes_per_image, block_b=16)
    per_image_probs = [jax.block_until_ready(p) for p in per_image_probs]

    merged = jnp.concatenate(per_image_probs, axis=0)
    ref = _reference(x, model.w_packed, model.b_packed, model.group_sizes, model.a_total)

    assert merged.shape == (B, model.a_total)
    assert [p.shape[0] for p in per_image_probs] == num_boxes_per_image
    err = float(jnp.max(jnp.abs(merged - ref)))
    assert jnp.allclose(merged, ref, atol=1e-4, rtol=1e-4), f"max abs err {err}"
    # each attribute-group's probabilities sum to 1
    start = 0
    for g in model.group_sizes:
        s = jnp.sum(merged[:, start:start + g], axis=1)
        assert jnp.allclose(s, jnp.ones_like(s), atol=1e-4)
        start += g

    print("KERNEL_OK")
</pallas_src>

<mosaic_0001>
module attributes {stable_mosaic.version = 11 : i64} {
  func.func @_attr_kernel(%arg0: i32, %arg1: memref<16x32xbf16, #tpu.memory_space<vmem>>, %arg2: memref<32x128xbf16, #tpu.memory_space<vmem>>, %arg3: memref<1x128xf32, #tpu.memory_space<vmem>>, %arg4: memref<16x128xf32, #tpu.memory_space<vmem>>) attributes {dimension_semantics = [#tpu.dimension_semantics<parallel>], iteration_bounds = array<i64: 3>, scalar_prefetch = 0 : i64, scratch_operands = 0 : i64, tpu.core_type = #tpu.core_type<tc>, window_params = [{transform_indices = @transform_0, window_bounds = array<i64: 16, 32>}, {pipeline_mode = #tpu.pipeline_mode<synchronous>, transform_indices = @transform_1, window_bounds = array<i64: 32, 128>}, {pipeline_mode = #tpu.pipeline_mode<synchronous>, transform_indices = @transform_2, window_bounds = array<i64: 1, 128>}, {transform_indices = @transform_3, window_bounds = array<i64: 16, 128>}]} {
    %c0 = arith.constant 0 : index
    %c0_0 = arith.constant 0 : index
    %0 = vector.load %arg1[%c0, %c0_0] : memref<16x32xbf16, #tpu.memory_space<vmem>>, vector<16x32xbf16>
    %c0_1 = arith.constant 0 : index
    %c0_2 = arith.constant 0 : index
    %1 = vector.load %arg2[%c0_1, %c0_2] : memref<32x128xbf16, #tpu.memory_space<vmem>>, vector<32x128xbf16>
    %cst = arith.constant dense<0.000000e+00> : vector<16x128xf32>
    %2 = tpu.matmul %0, %1, %cst {dimension_numbers = #tpu.dot_dimension_numbers<[1], [0], [0], [1], [0, 0, 1, 1], [], []>} : vector<16x32xbf16>, vector<32x128xbf16>, vector<16x128xf32> -> vector<16x128xf32>
    %c0_3 = arith.constant 0 : index
    %c0_4 = arith.constant 0 : index
    %3 = vector.load %arg3[%c0_3, %c0_4] : memref<1x128xf32, #tpu.memory_space<vmem>>, vector<1x128xf32>
    %4 = vector.broadcast %3 : vector<1x128xf32> to vector<16x128xf32>
    %5 = arith.addf %2, %4 : vector<16x128xf32>
    %6 = tpu.iota {dimensions = array<i32: 1>} : vector<1x128xi32>
    %cst_5 = arith.constant 0.000000e+00 : f32
    %7 = vector.broadcast %cst_5 : f32 to vector<16x128xf32>
    %c0_i32 = arith.constant 0 : i32
    %8 = vector.broadcast %c0_i32 : i32 to vector<1x128xi32>
    %9 = arith.cmpi sge, %6, %8 : vector<1x128xi32>
    %c6_i32 = arith.constant 6 : i32
    %10 = vector.broadcast %c6_i32 : i32 to vector<1x128xi32>
    %11 = arith.cmpi slt, %6, %10 : vector<1x128xi32>
    %12 = arith.andi %9, %11 : vector<1x128xi1>
    %cst_6 = arith.constant 0xFF800000 : f32
    %13 = vector.shape_cast %12 : vector<1x128xi1> to vector<1x128xi1>
    %14 = vector.broadcast %13 : vector<1x128xi1> to vector<16x128xi1>
    %15 = vector.broadcast %cst_6 : f32 to vector<16x128xf32>
    %16 = arith.select %14, %5, %15 : vector<16x128xi1>, vector<16x128xf32>
    %cst_7 = arith.constant dense<0xFF800000> : vector<16xf32>
    %17 = vector.multi_reduction <maximumf>, %16, %cst_7 [1] : vector<16x128xf32> to vector<16xf32>
    %18 = vector.shape_cast %17 : vector<16xf32> to vector<16x1xf32>
    %19 = vector.shape_cast %12 : vector<1x128xi1> to vector<1x128xi1>
    %20 = vector.broadcast %19 : vector<1x128xi1> to vector<16x128xi1>
    %21 = vector.shape_cast %18 : vector<16x1xf32> to vector<16x1xf32>
    %22 = vector.broadcast %21 : vector<16x1xf32> to vector<16x128xf32>
    %23 = arith.select %20, %22, %7 : vector<16x128xi1>, vector<16x128xf32>
    %c6_i32_8 = arith.constant 6 : i32
    %24 = vector.broadcast %c6_i32_8 : i32 to vector<1x128xi32>
    %25 = arith.cmpi sge, %6, %24 : vector<1x128xi32>
    %c10_i32 = arith.constant 10 : i32
    %26 = vector.broadcast %c10_i32 : i32 to vector<1x128xi32>
    %27 = arith.cmpi slt, %6, %26 : vector<1x128xi32>
    %28 = arith.andi %25, %27 : vector<1x128xi1>
    %cst_9 = arith.constant 0xFF800000 : f32
    %29 = vector.shape_cast %28 : vector<1x128xi1> to vector<1x128xi1>
    %30 = vector.broadcast %29 : vector<1x128xi1> to vector<16x128xi1>
    %31 = vector.broadcast %cst_9 : f32 to vector<16x128xf32>
    %32 = arith.select %30, %5, %31 : vector<16x128xi1>, vector<16x128xf32>
    %cst_10 = arith.constant dense<0xFF800000> : vector<16xf32>
    %33 = vector.multi_reduction <maximumf>, %32, %cst_10 [1] : vector<16x128xf32> to vector<16xf32>
    %34 = vector.shape_cast %33 : vector<16xf32> to vector<16x1xf32>
    %35 = vector.shape_cast %28 : vector<1x128xi1> to vector<1x128xi1>
    %36 = vector.broadcast %35 : vector<1x128xi1> to vector<16x128xi1>
    %37 = vector.shape_cast %34 : vector<16x1xf32> to vector<16x1xf32>
    %38 = vector.broadcast %37 : vector<16x1xf32> to vector<16x128xf32>
    %39 = arith.select %36, %38, %23 : vector<16x128xi1>, vector<16x128xf32>
    %c10_i32_11 = arith.constant 10 : i32
    %40 = vector.broadcast %c10_i32_11 : i32 to vector<1x128xi32>
    %41 = arith.cmpi sge, %6, %40 : vector<1x128xi32>
    %c13_i32 = arith.constant 13 : i32
    %42 = vector.broadcast %c13_i32 : i32 to vector<1x128xi32>
    %43 = arith.cmpi slt, %6, %42 : vector<1x128xi32>
    %44 = arith.andi %41, %43 : vector<1x128xi1>
    %cst_12 = arith.constant 0xFF800000 : f32
    %45 = vector.shape_cast %44 : vector<1x128xi1> to vector<1x128xi1>
    %46 = vector.broadcast %45 : vector<1x128xi1> to vector<16x128xi1>
    %47 = vector.broadcast %cst_12 : f32 to vector<16x128xf32>
    %48 = arith.select %46, %5, %47 : vector<16x128xi1>, vector<16x128xf32>
    %cst_13 = arith.constant dense<0xFF800000> : vector<16xf32>
    %49 = vector.multi_reduction <maximumf>, %48, %cst_13 [1] : vector<16x128xf32> to vector<16xf32>
    %50 = vector.shape_cast %49 : vector<16xf32> to vector<16x1xf32>
    %51 = vector.shape_cast %44 : vector<1x128xi1> to vector<1x128xi1>
    %52 = vector.broadcast %51 : vector<1x128xi1> to vector<16x128xi1>
    %53 = vector.shape_cast %50 : vector<16x1xf32> to vector<16x1xf32>
    %54 = vector.broadcast %53 : vector<16x1xf32> to vector<16x128xf32>
    %55 = arith.select %52, %54, %39 : vector<16x128xi1>, vector<16x128xf32>
    %c13_i32_14 = arith.constant 13 : i32
    %56 = vector.broadcast %c13_i32_14 : i32 to vector<1x128xi32>
    %57 = arith.cmpi slt, %6, %56 : vector<1x128xi32>
    %58 = arith.subf %5, %55 : vector<16x128xf32>
    %59 = math.exp %58 : vector<16x128xf32>
    %cst_15 = arith.constant 0.000000e+00 : f32
    %60 = vector.shape_cast %57 : vector<1x128xi1> to vector<1x128xi1>
    %61 = vector.broadcast %60 : vector<1x128xi1> to vector<16x128xi1>
    %62 = vector.broadcast %cst_15 : f32 to vector<16x128xf32>
    %63 = arith.select %61, %59, %62 : vector<16x128xi1>, vector<16x128xf32>
    %cst_16 = arith.constant 1.000000e+00 : f32
    %64 = vector.broadcast %cst_16 : f32 to vector<16x128xf32>
    %c0_i32_17 = arith.constant 0 : i32
    %65 = vector.broadcast %c0_i32_17 : i32 to vector<1x128xi32>
    %66 = arith.cmpi sge, %6, %65 : vector<1x128xi32>
    %c6_i32_18 = arith.constant 6 : i32
    %67 = vector.broadcast %c6_i32_18 : i32 to vector<1x128xi32>
    %68 = arith.cmpi slt, %6, %67 : vector<1x128xi32>
    %69 = arith.andi %66, %68 : vector<1x128xi1>
    %cst_19 = arith.constant 0.000000e+00 : f32
    %70 = vector.shape_cast %69 : vector<1x128xi1> to vector<1x128xi1>
    %71 = vector.broadcast %70 : vector<1x128xi1> to vector<16x128xi1>
    %72 = vector.broadcast %cst_19 : f32 to vector<16x128xf32>
    %73 = arith.select %71, %63, %72 : vector<16x128xi1>, vector<16x128xf32>
    %cst_20 = arith.constant dense<0.000000e+00> : vector<16xf32>
    %74 = vector.multi_reduction <add>, %73, %cst_20 [1] : vector<16x128xf32> to vector<16xf32>
    %75 = vector.shape_cast %74 : vector<16xf32> to vector<16x1xf32>
    %76 = vector.shape_cast %69 : vector<1x128xi1> to vector<1x128xi1>
    %77 = vector.broadcast %76 : vector<1x128xi1> to vector<16x128xi1>
    %78 = vector.shape_cast %75 : vector<16x1xf32> to vector<16x1xf32>
    %79 = vector.broadcast %78 : vector<16x1xf32> to vector<16x128xf32>
    %80 = arith.select %77, %79, %64 : vector<16x128xi1>, vector<16x128xf32>
    %c6_i32_21 = arith.constant 6 : i32
    %81 = vector.broadcast %c6_i32_21 : i32 to vector<1x128xi32>
    %82 = arith.cmpi sge, %6, %81 : vector<1x128xi32>
    %c10_i32_22 = arith.constant 10 : i32
    %83 = vector.broadcast %c10_i32_22 : i32 to vector<1x128xi32>
    %84 = arith.cmpi slt, %6, %83 : vector<1x128xi32>
    %85 = arith.andi %82, %84 : vector<1x128xi1>
    %cst_23 = arith.constant 0.000000e+00 : f32
    %86 = vector.shape_cast %85 : vector<1x128xi1> to vector<1x128xi1>
    %87 = vector.broadcast %86 : vector<1x128xi1> to vector<16x128xi1>
    %88 = vector.broadcast %cst_23 : f32 to vector<16x128xf32>
    %89 = arith.select %87, %63, %88 : vector<16x128xi1>, vector<16x128xf32>
    %cst_24 = arith.constant dense<0.000000e+00> : vector<16xf32>
    %90 = vector.multi_reduction <add>, %89, %cst_24 [1] : vector<16x128xf32> to vector<16xf32>
    %91 = vector.shape_cast %90 : vector<16xf32> to vector<16x1xf32>
    %92 = vector.shape_cast %85 : vector<1x128xi1> to vector<1x128xi1>
    %93 = vector.broadcast %92 : vector<1x128xi1> to vector<16x128xi1>
    %94 = vector.shape_cast %91 : vector<16x1xf32> to vector<16x1xf32>
    %95 = vector.broadcast %94 : vector<16x1xf32> to vector<16x128xf32>
    %96 = arith.select %93, %95, %80 : vector<16x128xi1>, vector<16x128xf32>
    %c10_i32_25 = arith.constant 10 : i32
    %97 = vector.broadcast %c10_i32_25 : i32 to vector<1x128xi32>
    %98 = arith.cmpi sge, %6, %97 : vector<1x128xi32>
    %c13_i32_26 = arith.constant 13 : i32
    %99 = vector.broadcast %c13_i32_26 : i32 to vector<1x128xi32>
    %100 = arith.cmpi slt, %6, %99 : vector<1x128xi32>
    %101 = arith.andi %98, %100 : vector<1x128xi1>
    %cst_27 = arith.constant 0.000000e+00 : f32
    %102 = vector.shape_cast %101 : vector<1x128xi1> to vector<1x128xi1>
    %103 = vector.broadcast %102 : vector<1x128xi1> to vector<16x128xi1>
    %104 = vector.broadcast %cst_27 : f32 to vector<16x128xf32>
    %105 = arith.select %103, %63, %104 : vector<16x128xi1>, vector<16x128xf32>
    %cst_28 = arith.constant dense<0.000000e+00> : vector<16xf32>
    %106 = vector.multi_reduction <add>, %105, %cst_28 [1] : vector<16x128xf32> to vector<16xf32>
    %107 = vector.shape_cast %106 : vector<16xf32> to vector<16x1xf32>
    %108 = vector.shape_cast %101 : vector<1x128xi1> to vector<1x128xi1>
    %109 = vector.broadcast %108 : vector<1x128xi1> to vector<16x128xi1>
    %110 = vector.shape_cast %107 : vector<16x1xf32> to vector<16x1xf32>
    %111 = vector.broadcast %110 : vector<16x1xf32> to vector<16x128xf32>
    %112 = arith.select %109, %111, %96 : vector<16x128xi1>, vector<16x128xf32>
    %113 = tpu.reciprocal %112 : vector<16x128xf32> -> vector<16x128xf32>
    %114 = arith.mulf %63, %113 : vector<16x128xf32>
    %c0_29 = arith.constant 0 : index
    %c0_30 = arith.constant 0 : index
    %115 = vector.load %arg4[%c0_29, %c0_30] : memref<16x128xf32, #tpu.memory_space<vmem>>, vector<16x128xf32>
    tpu.vector_store %arg4[%c0_29, %c0_30], %114 {strides = array<i32>} : memref<16x128xf32, #tpu.memory_space<vmem>>, vector<16x128xf32>,
    return
  }
  func.func @transform_0(%arg0: i32) -> (i32, i32) {
    %c0_i32 = arith.constant 0 : i32
    %c0_i32_0 = arith.constant 0 : i32
    return %arg0, %c0_i32 : i32, i32
  }
  func.func @transform_1(%arg0: i32) -> (i32, i32) {
    %c0_i32 = arith.constant 0 : i32
    %c0_i32_0 = arith.constant 0 : i32
    %c0_i32_1 = arith.constant 0 : i32
    return %c0_i32, %c0_i32_0 : i32, i32
  }
  func.func @transform_2(%arg0: i32) -> (i32, i32) {
    %c0_i32 = arith.constant 0 : i32
    %c0_i32_0 = arith.constant 0 : i32
    %c0_i32_1 = arith.constant 0 : i32
    return %c0_i32, %c0_i32_0 : i32, i32
  }
  func.func @transform_3(%arg0: i32) -> (i32, i32) {
    %c0_i32 = arith.constant 0 : i32
    %c0_i32_0 = arith.constant 0 : i32
    return %arg0, %c0_i32 : i32, i32
  }
}

</mosaic_0001>

<llo_original>
// kernel: tpu_custom_call.1
$region0: #{tpu_custom_call.1}
  #allocation0 [shape = 'u32[]', space=smem, size = 0x4, offset = 0x4, fixed_abs, tag = 'smem constant byte address 0x4 - core index']
  #allocation1 [shape = 'u32[72,128]{1,0:T(1,128)}', space=vmem, size = 0x9000, scoped, tag = 'internal scratch']
  %s0 = inlined_call_operand.vmem [shape: bf16[48,32], index: 0, kind: input, shape index: {}]
  %s1 = inlined_call_operand.vmem [shape: bf16[32,128], index: 1, kind: input, shape index: {}]
  %s2 = inlined_call_operand.vmem [shape: f32[1,128], index: 2, kind: input, shape index: {}]
  %s3 = inlined_call_operand.hbm [shape: f32[48,128], index: 3, kind: output, shape index: {}]
  %s4 = sld [smem:[#allocation0]]
  $region45: #{tpu_custom_call.1} parent=0
    _
  %s6 = ssub.s32 1, %s4
  %s7 = scalar_select 0, %s6, %s4
  $region1: #{tpu_custom_call.1} parent=0
    #allocation2 [shape = 'u8[16384]{0}', space=vmem, size = 0x4000, scoped, tag = 'output window, operand 0']
    #allocation3 [shape = 's32[2]{0}', space=sflag, size = 0x8, scoped, tag = 'scoped memory for tpu_custom_call.1']
    %8 = vsyncpa [#allocation3], 0
    %s9 = scalar_lea.sflag [#allocation3], 1
    %10 = vsyncpa %s9, 0
    loop: start=0, step=1, limit=5
    $region2: #{tpu_custom_call.1} parent=1 // loop_pre_header
      _
    $region3: #{tpu_custom_call.1} parent=1 // loop_header
      %s12 = sphi 0, %s16
      %p13 = scmp.ge.s32.totalorder %s12, 5
      %s22 = sphi 0, %s24
      %s25 = sphi 0, %s22
      %s26 = sphi 0, %s25
      %s42 = sphi 0, %s26
      %s46 = sphi 0, %s46
      %s48 = sphi 0, %s46
      %s49 = sphi 0, %s48
      %s63 = sphi 0, %s49
      %s67 = sphi 0, %s67
      %s69 = sphi 0, %s67
      %s70 = sphi 0, %s69
      %s84 = sphi 0, %s70
      %s90 = sphi 0, %s92
      %s93 = sphi 0, %s90
      %s94 = sphi 0, %s93
      %s110 = sphi 0, %s94
    $region4: #{tpu_custom_call.1} parent=1 // loop_header_branch
      %15 = sbr.rel (%p13) target = $region8
    $region5: #{tpu_custom_call.1} parent=1 // loop_body
      %s17 = ssub.s32 %s12, 1
      %s18 = ssub.s32 %s12, 2
      %s19 = sadd.s32 %s12, 1
      %s20 = ssub.s32 %s12, %s19
      %p21 = scmp.eq.s32.totalorder %s20, 0
      %s23 = sadd.s32 %s22, 1
      %s24 = scalar_select %p21, %s22, %s23
      %p27 = pneg %p21
      %p28 = scmp.eq.s32.totalorder %s12, 2
      %p29 = por %p27, %p28
      %p30 = scmp.ne.s32.totalorder %s22, %s25
      %p31 = scmp.eq.s32.totalorder %s12, 0
      %p32 = por %p30, %p31
      %p33 = scmp.ne.s32.totalorder %s22, %s25
      %p34 = scmp.eq.s32.totalorder %s17, 2
      %p35 = por %p33, %p34
      %p36 = scmp.ne.s32.totalorder %s25, %s26
      %p37 = scmp.eq.s32.totalorder %s17, 0
      %p38 = por %p36, %p37
      %p39 = scmp.ne.s32.totalorder %s25, %s26
      %p40 = scmp.eq.s32.totalorder %s18, 2
      %p41 = por %p39, %p40
      %p43 = scmp.ne.s32.totalorder %s26, %s42
      %p44 = scmp.eq.s32.totalorder %s18, 0
      %p45 = por %p43, %p44
      %s47 = sadd.s32 %s46, 1
      %p50 = scmp.eq.s32.totalorder %s12, 2
      %p51 = scmp.ne.s32.totalorder %s46, %s48
      %p52 = scmp.eq.s32.totalorder %s12, 0
      %p53 = por %p51, %p52
      %p54 = scmp.ne.s32.totalorder %s46, %s48
      %p55 = scmp.eq.s32.totalorder %s17, 2
      %p56 = por %p54, %p55
      %p57 = scmp.ne.s32.totalorder %s48, %s49
      %p58 = scmp.eq.s32.totalorder %s17, 0
      %p59 = por %p57, %p58
      %p60 = scmp.ne.s32.totalorder %s48, %s49
      %p61 = scmp.eq.s32.totalorder %s18, 2
      %p62 = por %p60, %p61
      %p64 = scmp.ne.s32.totalorder %s49, %s63
      %p65 = scmp.eq.s32.totalorder %s18, 0
      %p66 = por %p64, %p65
      %s68 = sadd.s32 %s67, 1
      %p71 = scmp.eq.s32.totalorder %s12, 2
      %p72 = scmp.ne.s32.totalorder %s67, %s69
      %p73 = scmp.eq.s32.totalorder %s12, 0
      %p74 = por %p72, %p73
      %p75 = scmp.ne.s32.totalorder %s67, %s69
      %p76 = scmp.eq.s32.totalorder %s17, 2
      %p77 = por %p75, %p76
      %p78 = scmp.ne.s32.totalorder %s69, %s70
      %p79 = scmp.eq.s32.totalorder %s17, 0
      %p80 = por %p78, %p79
      %p81 = scmp.ne.s32.totalorder %s69, %s70
      %p82 = scmp.eq.s32.totalorder %s18, 2
      %p83 = por %p81, %p82
      %p85 = scmp.ne.s32.totalorder %s70, %s84
      %p86 = scmp.eq.s32.totalorder %s18, 0
      %p87 = por %p85, %p86
      %s88 = ssub.s32 %s12, %s19
      %p89 = scmp.eq.s32.totalorder %s88, 0
      %s91 = sadd.s32 %s90, 1
      %s92 = scalar_select %p89, %s90, %s91
      %p95 = pneg %p89
      %p96 = scmp.eq.s32.totalorder %s12, 2
      %p97 = por %p95, %p96
      %p98 = scmp.ne.s32.totalorder %s90, %s93
      %p99 = scmp.eq.s32.totalorder %s12, 0
      %p100 = por %p98, %p99
      %p101 = scmp.ne.s32.totalorder %s90, %s93
      %p102 = scmp.eq.s32.totalorder %s17, 2
      %p103 = por %p101, %p102
      %p104 = scmp.ne.s32.totalorder %s93, %s94
      %p105 = scmp.eq.s32.totalorder %s17, 0
      %p106 = por %p104, %p105
      %p107 = scmp.ne.s32.totalorder %s93, %s94
      %p108 = scmp.eq.s32.totalorder %s18, 2
      %p109 = por %p107, %p108
      %p111 = scmp.ne.s32.totalorder %s94, %s110
      %p112 = scmp.eq.s32.totalorder %s18, 0
      %p113 = por %p111, %p112
      %p114 = scmp.le.s32.totalorder 1, %s12
      %p115 = scmp.lt.s32.totalorder %s12, 4
      %p116 = pnand %p114, %p115
      %p117 = pneg %p116
      // Predicated region
      $region9: #{tpu_custom_call.1} parent=5 // pred_check
        _
      $region10: #{tpu_custom_call.1} parent=5 // pred_check_branch
        %119 = sbr.rel (%p116) target = $region12
      $region11: #{tpu_custom_call.1} parent=5 // pred_region
        %s120 = ssub.s32 %s12, 1
        // Predicated region
        $region13: #{tpu_custom_call.1} parent=11 // pred_check
          %p121 = pneg %p59
        $region14: #{tpu_custom_call.1} parent=11 // pred_check_branch
          %123 = sbr.rel (%p121) target = $region16
        $region15: #{tpu_custom_call.1} parent=11 // pred_region
          _
        $region16: #{tpu_custom_call.1} parent=11 // pred_fallthru
          _
        // Predicated region
        $region17: #{tpu_custom_call.1} parent=11 // pred_check
          %p124 = pneg %p80
        $region18: #{tpu_custom_call.1} parent=11 // pred_check_branch
          %126 = sbr.rel (%p124) target = $region20
        $region19: #{tpu_custom_call.1} parent=11 // pred_region
          _
        $region20: #{tpu_custom_call.1} parent=11 // pred_fallthru
          _
      $region12: #{tpu_custom_call.1} parent=5 // pred_fallthru
        _
      %p127 = scmp.lt.s32.totalorder %s12, 3
      // Predicated region
      $region21: #{tpu_custom_call.1} parent=5 // pred_check
        %p128 = pneg %p127
      $region22: #{tpu_custom_call.1} parent=5 // pred_check_branch
        %130 = sbr.rel (%p128) target = $region24
      $region23: #{tpu_custom_call.1} parent=5 // pred_region
        // Predicated region
        $region25: #{tpu_custom_call.1} parent=23 // pred_check
          %p131 = pneg %p32
        $region26: #{tpu_custom_call.1} parent=23 // pred_check_branch
          %133 = sbr.rel (%p131) target = $region28
        $region27: #{tpu_custom_call.1} parent=23 // pred_region
          %s134 = smul.u32 2, %s12
          %p135 = scmp.lt.s32.totalorder %s134, 5
          %s136 = scalar_select %p135, %s134, 5
          %s137 = smul.addr %s136, 4
          %s138 = scalar_lea.vmem %s0, %s137
          %s139 = smul.u32 2, %s12
        $region28: #{tpu_custom_call.1} parent=23 // pred_fallthru
          _
      $region24: #{tpu_custom_call.1} parent=5 // pred_fallthru
        _
      %p140 = scmp.le.s32.totalorder 1, %s12
      %p141 = scmp.lt.s32.totalorder %s12, 4
      %p142 = pnand %p140, %p141
      %p143 = pneg %p142
      // Predicated region
      $region29: #{tpu_custom_call.1} parent=5 // pred_check
        _
      $region30: #{tpu_custom_call.1} parent=5 // pred_check_branch
        %145 = sbr.rel (%p142) target = $region32
      $region31: #{tpu_custom_call.1} parent=5 // pred_region
        %s146 = ssub.s32 %s12, 1
        %s147 = smul.u32 2, %s17
        %p148 = scmp.lt.s32.totalorder %s147, 5
        %s149 = scalar_select %p148, %s147, 5
        %s150 = smul.addr %s149, 4
        %s151 = scalar_lea.vmem %s0, %s150
        %p152 = pneg %p38
        %p153 = pneg %p35
        %p154 = pneg %p59
        %p155 = pneg %p56
        %p156 = pneg %p80
        %p157 = pneg %p77
        %p158 = pneg %p106
        %p159 = pneg %p103
        %s160 = sand.u32 %s93, 1
        %s161 = scalar_lea.sflag [#allocation3], %s160
        %s162 = sand.u32 %s93, 1
        %s163 = smul.addr %s162, 16
        %s164 = scalar_lea.vmem [#allocation2], %s163
        %s165 = smul.u32 2, %s17
        %p166 = scmp.lt.s32.totalorder %s165, 5
        %s167 = scalar_select %p166, %s165, 5
        %s168 = smul.addr %s167, 4
        %s169 = scalar_lea.vmem %s0, %s168
        %s170 = smul.u32 2, %s17
        %s171 = smul.u32 2, %s17
        %v173 = vld [vmem:[%s169] sm:$0xf]
        %v174 = vld [vmem:[%s169 + $0x4] sm:$0xf]
        %v175 = vld [vmem:[%s1] sm:$0xf]
        %v176 = vld [vmem:[%s1 + $0x4] sm:$0xf]
        %v177 = vld [vmem:[%s1 + $0x8] sm:$0xf]
        %v178 = vld [vmem:[%s1 + $0xc] sm:$0xf]
        %v179 = vld [vmem:[%s2] sm:$0x1]
        %v181 = vperm.slane %v179, 0
        %v185 = vunpack.c.l.b16 %v173
        %v186 = vunpack.c.l.b16 %v174
        %v187 = vpack.c.b16 %v186, %v185
        %v192 = vunpack.c.l.b16 %v175
        %v193 = vunpack.c.l.b16 %v176
        %v194 = vunpack.c.l.b16 %v177
        %v195 = vunpack.c.l.b16 %v178
        %v196 = vpack.c.b16 %v193, %v192
        %v197 = vpack.c.b16 %v195, %v194
        %vm200 = vcmask 261120
        %v202 = vsel %vm200, %v187, 0
        %204 = vmatpush.bf16.msra.mxu0 0
        %205 = vmatpush.bf16.msra.mxu0 0
        %206 = vmatpush.bf16.msra.mxu0 0
        %207 = vmatpush.bf16.msra.mxu0 0
        %208 = vmatpush.bf16.msra.mxu0 0
        %209 = vmatpush.bf16.msra.mxu0 0
        %210 = vmatpush.bf16.msra.mxu0 %v197
        %211 = vmatpush.bf16.msra.mxu0 %v196
        %212 = vmatmul.bf16.gmra.mxu0 %v202
        %v213 = vpop.f32.mrf.mxu0
        %v214 = vadd.f32 %v181, %v213
        %v215 = vpop.f32.mrf.mxu0
        %v216 = vadd.f32 %v181, %v215
        %217 = vdwg.mxu0
        %v218 = vlaneseq
        %v219 = vand.u32 %v218, 127
        %vm220 = vcmp.ge.s32.totalorder %v219, 0
        %vm221 = vcmp.lt.s32.totalorder %v219, 6
        %vm222 = vmand %vm220, %vm221
        %v223 = vsel %vm222, 1, 0
        %vm224 = vcmp.eq.s32.totalorder %v223, 1
        %v225 = vsel %vm224, %v214, -inf
        %v226 = vsel %vm224, %v216, -inf
        %227 = vmax.xlane.f32.xlu0 %v225
        %v228 = vpop.xlane.xlu0 %227
        %229 = vmax.xlane.f32.xlu0 %v226
        %v230 = vpop.xlane.xlu0 %229
        %v231 = vsel %vm224, %v228, 0.0
        %v232 = vsel %vm224, %v230, 0.0
        %vm233 = vcmp.ge.s32.totalorder %v219, 6
        %vm234 = vcmp.lt.s32.totalorder %v219, 10
        %vm235 = vmand %vm233, %vm234
        %v236 = vsel %vm235, 1, 0
        %vm237 = vcmp.eq.s32.totalorder %v236, 1
        %v238 = vsel %vm237, %v214, -inf
        %v239 = vsel %vm237, %v216, -inf
        %240 = vmax.xlane.f32.xlu0 %v238
        %v241 = vpop.xlane.xlu0 %240
        %242 = vmax.xlane.f32.xlu0 %v239
        %v243 = vpop.xlane.xlu0 %242
        %v244 = vsel %vm237, %v241, %v231
        %v245 = vsel %vm237, %v243, %v232
        %vm246 = vcmp.ge.s32.totalorder %v219, 10
        %vm247 = vcmp.lt.s32.totalorder %v219, 13
        %vm248 = vmand %vm246, %vm247
        %v249 = vsel %vm248, 1, 0
        %vm250 = vcmp.eq.s32.totalorder %v249, 1
        %v251 = vsel %vm250, %v214, -inf
        %v252 = vsel %vm250, %v216, -inf
        %253 = vmax.xlane.f32.xlu0 %v251
        %v254 = vpop.xlane.xlu0 %253
        %255 = vmax.xlane.f32.xlu0 %v252
        %v256 = vpop.xlane.xlu0 %255
        %v257 = vsel %vm250, %v254, %v244
        %v258 = vsel %vm250, %v256, %v245
        %v259 = vsub.f32 %v214, %v257
        %v260 = vsub.f32 %v216, %v258
        %v261 = vmul.f32 %v259, 1.442695
        %v262 = vpow.pop %v261
        %v263 = vmul.f32 %v260, 1.442695
        %v264 = vpow.pop %v263
        %v265 = vsel %vm247, 1, 0
        %vm266 = vcmp.eq.s32.totalorder %v265, 1
        %v267 = vsel %vm266, %v262, 0.0
        %v268 = vsel %vm266, %v264, 0.0
        %v269 = vsel %vm224, %v267, 0.0
        %v270 = vsel %vm224, %v268, 0.0
        %271 = vadd.xlane.f32.xlu0 %v269
        %v272 = vpop.xlane.xlu0 %271
        %273 = vadd.xlane.f32.xlu0 %v270
        %v274 = vpop.xlane.xlu0 %273
        %v275 = vsel %vm224, %v272, 1.0
        %v276 = vsel %vm224, %v274, 1.0
        %v277 = vsel %vm237, %v267, 0.0
        %v278 = vsel %vm237, %v268, 0.0
        %279 = vadd.xlane.f32.xlu0 %v277
        %v280 = vpop.xlane.xlu0 %279
        %281 = vadd.xlane.f32.xlu0 %v278
        %v282 = vpop.xlane.xlu0 %281
        %v283 = vsel %vm237, %v280, %v275
        %v284 = vsel %vm237, %v282, %v276
        %v285 = vsel %vm250, %v267, 0.0
        %v286 = vsel %vm250, %v268, 0.0
        %287 = vadd.xlane.f32.xlu0 %v285
        %v288 = vpop.xlane.xlu0 %287
        %289 = vadd.xlane.f32.xlu0 %v286
        %v290 = vpop.xlane.xlu0 %289
        %v291 = vsel %vm250, %v288, %v283
        %v292 = vsel %vm250, %v290, %v284
        %v293 = vrcp.pop %v291
        %v294 = vmul.f32 %v291, %v293
        %v295 = vsub.f32 1.0, %v294
        %v296 = vmul.f32 %v293, %v295
        %v297 = vadd.f32 %v293, %v296
        %vm298 = vweird.f32 %v291
        %vm299 = vweird.f32 %v293
        %vm300 = vmor %vm298, %vm299
        %v301 = vsel %vm300, %v293, %v297
        %v302 = vand.u32 2147483647, %v291
        %vm303 = vcmp.eq.f32.partialorder %v302, 8.507059e+37
        %v304 = vand.u32 %v291, 2147483648
        %v305 = vor.u32 1.1754944e-38, %v304
        %v306 = vsel %vm303, %v305, %v301
        %v307 = vrcp.pop %v292
        %v308 = vmul.f32 %v292, %v307
        %v309 = vsub.f32 1.0, %v308
        %v310 = vmul.f32 %v307, %v309
        %v311 = vadd.f32 %v307, %v310
        %vm312 = vweird.f32 %v292
        %vm313 = vweird.f32 %v307
        %vm314 = vmor %vm312, %vm313
        %v315 = vsel %vm314, %v307, %v311
        %v316 = vand.u32 2147483647, %v292
        %vm317 = vcmp.eq.f32.partialorder %v316, 8.507059e+37
        %v318 = vand.u32 %v292, 2147483648
        %v319 = vor.u32 1.1754944e-38, %v318
        %v320 = vsel %vm317, %v319, %v315
        %v321 = vmul.f32 %v267, %v306
        %v322 = vmul.f32 %v268, %v320
        %323 = vst [vmem:[%s164] sm:$0xff] %v321
        %324 = vst [vmem:[%s164 + $0x8] sm:$0xff] %v322
        %s325 = sand.u32 %s93, 1
        %s326 = scalar_lea.sflag [#allocation3], %s325
        %s327 = sand.u32 %s93, 1
        %s328 = smul.addr %s327, 16
        %s329 = scalar_lea.vmem [#allocation2], %s328
        // Predicated region
        $region33: #{tpu_custom_call.1} parent=31 // pred_check
          %p330 = pneg %p103
        $region34: #{tpu_custom_call.1} parent=31 // pred_check_branch
          %332 = sbr.rel (%p330) target = $region36
        $region35: #{tpu_custom_call.1} parent=31 // pred_region
          %s333 = smul.u32 2, %s17
          %335 = vsyncadd %s326, 0
          %s336 = smul.addr %s333, 8
          %s337 = scalar_lea.hbm %s3, %s336
          %s338 = sshll.u32 %s329, 4
          %s339 = int_to_ptr.vmem [resolvable:$true] %s338
          %s340 = sshll.u32 %s337, 4
          %s341 = int_to_ptr.hbm [resolvable:$true] %s340
          %346 = dma.vmem_to_hbm [thread:$0]  %s339, 256, %s341, %s326, 128, 128, 8
        $region36: #{tpu_custom_call.1} parent=31 // pred_fallthru
          _
      $region32: #{tpu_custom_call.1} parent=5 // pred_fallthru
        _
      %p347 = scmp.le.s32.totalorder 2, %s12
      // Predicated region
      $region37: #{tpu_custom_call.1} parent=5 // pred_check
        %p348 = pneg %p347
      $region38: #{tpu_custom_call.1} parent=5 // pred_check_branch
        %350 = sbr.rel (%p348) target = $region40
      $region39: #{tpu_custom_call.1} parent=5 // pred_region
        %s351 = ssub.s32 %s12, 2
        // Predicated region
        $region41: #{tpu_custom_call.1} parent=39 // pred_check
          %p352 = pneg %p109
        $region42: #{tpu_custom_call.1} parent=39 // pred_check_branch
          %354 = sbr.rel (%p352) target = $region44
        $region43: #{tpu_custom_call.1} parent=39 // pred_region
          %s355 = sand.u32 %s94, 1
          %s356 = scalar_lea.sflag [#allocation3], %s355
          %s357 = sand.u32 %s94, 1
          %s358 = smul.addr %s357, 16
          %s359 = scalar_lea.vmem [#allocation2], %s358
          %361 = dma.done %s356, 256
        $region44: #{tpu_custom_call.1} parent=39 // pred_fallthru
          _
      $region40: #{tpu_custom_call.1} parent=5 // pred_fallthru
        _
    $region6: #{tpu_custom_call.1} parent=1 // loop_footer
      %s16 = sadd.s32 1, %s12
    $region7: #{tpu_custom_call.1} parent=1 // loop_footer_branch
      %11 = sbr.rel target = $region3
    $region8: #{tpu_custom_call.1} parent=1 // loop_exit
      _
    %362 = vsyncpa [#allocation3], 1
    %s363 = scalar_lea.sflag [#allocation3], 1
    %364 = vsyncpa %s363, 1

</llo_original>
